<compile_context>
chip_gen: v7x
topology: tpu7x:2x2x1
jax: 0.10.0
libtpu: 0.0.40
codegen_flags: <defaults>
</compile_context>

<pallas_src>
import functools

import jax
import jax.numpy as jnp
from jax.experimental import pallas as pl
from jax.experimental.pallas import tpu as pltpu

LANE = 128          # TPU lane width: pad trailing (hidden/class) dims to this
NEG_INF = -1e30     # bias for padded class lanes (never wins max, exp() -> exactly 0)


def _round_up(n, m):
    return ((n + m - 1) // m) * m


def _cdiv(a, b):
    return (a + b - 1) // b


def ffnn_kernel(x_ref, w1_ref, b1_ref, w2_ref, b2_ref, o_ref):
    """One batch tile: x@W1 + b1 -> ReLU -> @W2 + b2 -> log-softmax over classes."""
    # Hidden layer: bf16 x bf16 on the MXU, f32 accumulation; bias/ReLU in f32.
    hidden = jnp.dot(x_ref[...], w1_ref[...],
                     preferred_element_type=jnp.float32) + b1_ref[...]
    act = jnp.maximum(hidden, 0.0)

    # Output layer (cast activations back to bf16 for the MXU).
    logits = jnp.dot(act.astype(w2_ref.dtype), w2_ref[...],
                     preferred_element_type=jnp.float32) + b2_ref[...]

    # Numerically stable log-softmax over the lane-padded class axis.
    # Padded lanes carry a -1e30 bias, so they never win the max and exp() -> 0.
    m = jnp.max(logits, axis=-1, keepdims=True)
    shifted = logits - m
    lse = jnp.log(jnp.sum(jnp.exp(shifted), axis=-1, keepdims=True))
    o_ref[...] = (shifted - lse).astype(o_ref.dtype)


def prepare_params(w1, b1, w2, b2):
    """One-time (load-time) padding + bf16 casting of parameters.

    Hoisted out of the per-call path so each forward only touches x and the output.
    Zero-padded hidden columns/rows contribute exactly nothing; padded class lanes
    get a -1e30 bias so the log-softmax stays exact.
    """
    D, H = w1.shape
    C = w2.shape[1]
    Hp = _round_up(H, LANE)
    Cp = _round_up(C, LANE)

    w1p = jnp.zeros((D, Hp), jnp.bfloat16).at[:, :H].set(w1.astype(jnp.bfloat16))
    b1p = jnp.zeros((1, Hp), jnp.float32).at[:, :H].set(
        jnp.reshape(b1, (1, H)).astype(jnp.float32))
    w2p = jnp.zeros((Hp, Cp), jnp.bfloat16).at[:H, :C].set(w2.astype(jnp.bfloat16))
    b2p = jnp.full((1, Cp), NEG_INF, jnp.float32).at[:, :C].set(
        jnp.reshape(b2, (1, C)).astype(jnp.float32))
    return w1p, b1p, w2p, b2p, C


@functools.partial(jax.jit, static_argnames=("n_classes", "block_b"))
def ffnn_forward(x, w1p, b1p, w2p, b2p, *, n_classes, block_b=2048):
    """x: (B, D) f32; pre-padded params from prepare_params -> (B, n_classes) bf16 log-probs."""
    B, D = x.shape
    Hp = w1p.shape[1]
    Cp = w2p.shape[1]

    # Balanced batch tiles: bound last-tile padding waste to <16 rows per tile, and
    # keep >=2 grid steps for moderately large batches so the "parallel" batch axis
    # can be split across v7x's two TensorCores (harmless extra step on v5e/v6e).
    num_tiles = _cdiv(B, block_b)
    if num_tiles == 1 and B >= 256:
        num_tiles = 2
    TB = _round_up(_cdiv(B, num_tiles), 16)     # multiple of 16 for bf16 sublane packing
    Bp = TB * num_tiles

    # Only the batch dim is padded; the feature dim stays D (BlockSpec last dim ==
    # full array dim is legal), so x HBM traffic is not inflated.
    xp = x.astype(jnp.bfloat16)
    if Bp != B:
        xp = jnp.zeros((Bp, D), jnp.bfloat16).at[:B].set(xp)

    cost = pl.CostEstimate(
        flops=2 * Bp * D * Hp + 2 * Bp * Hp * Cp,
        transcendentals=Bp * Cp + Bp,                      # exp + log per row
        bytes_accessed=(xp.size * 2 + w1p.size * 2 + w2p.size * 2
                        + b1p.size * 4 + b2p.size * 4 + Bp * Cp * 2),
    )

    out_padded = pl.pallas_call(
        ffnn_kernel,
        out_shape=jax.ShapeDtypeStruct((Bp, Cp), jnp.bfloat16),   # bf16 writeback
        grid=(num_tiles,),
        in_specs=[
            pl.BlockSpec((TB, D), lambda i: (i, 0)),       # x: tiled over batch, un-padded D
            pl.BlockSpec((D, Hp), lambda i: (0, 0)),       # W1: resident
            pl.BlockSpec((1, Hp), lambda i: (0, 0)),       # b1: resident
            pl.BlockSpec((Hp, Cp), lambda i: (0, 0)),      # W2: resident
            pl.BlockSpec((1, Cp), lambda i: (0, 0)),       # b2: resident
        ],
        out_specs=pl.BlockSpec((TB, Cp), lambda i: (i, 0)),  # lane-dense (TB,128) slab
        compiler_params=pltpu.CompilerParams(
            dimension_semantics=("parallel",),             # batch tiles shard over TCs (v7x)
            vmem_limit_bytes=32 * 1024 * 1024,             # explicit; under v7x's 64 MiB
        ),
        cost_estimate=cost,
    )(xp, w1p, b1p, w2p, b2p)

    return out_padded[:B, :n_classes]


def reference_forward(x, w1, b1, w2, b2):
    h = jnp.maximum(x @ w1 + b1, 0.0)
    logits = h @ w2 + b2
    return jax.nn.log_softmax(logits, axis=-1)


if __name__ == "__main__":
    # Module-consistent small shapes: input_dim=32, h=32, output_dim=5, batch=8.
    B, D, H, C = 8, 32, 32, 5

    key = jax.random.PRNGKey(0)
    kx, k1, kb1, k2, kb2 = jax.random.split(key, 5)

    x = jax.random.normal(kx, (B, D), dtype=jnp.float32)
    bound1 = 1.0 / (D ** 0.5)
    w1 = jax.random.uniform(k1, (D, H), jnp.float32, -bound1, bound1)
    b1 = jax.random.uniform(kb1, (1, H), jnp.float32, -bound1, bound1)
    bound2 = 1.0 / (H ** 0.5)
    w2 = jax.random.uniform(k2, (H, C), jnp.float32, -bound2, bound2)
    b2 = jax.random.uniform(kb2, (1, C), jnp.float32, -bound2, bound2)

    # One-time parameter prep (outside the hot path).
    w1p, b1p, w2p, b2p, n_classes = prepare_params(w1, b1, w2, b2)

    out = ffnn_forward(x, w1p, b1p, w2p, b2p, n_classes=n_classes)
    out = jax.block_until_ready(out)

    ref = reference_forward(x, w1, b1, w2, b2)
    assert out.shape == (B, C)
    out_f32 = out.astype(jnp.float32)
    # bf16 matmul operands + bf16 output vs pure-f32 reference -> loose tolerance.
    assert jnp.allclose(out_f32, ref, atol=2e-2, rtol=2e-2), "mismatch vs reference"
    # log-softmax sanity: each row exponentiates to ~a probability distribution.
    assert jnp.allclose(jnp.exp(out_f32).sum(axis=-1), 1.0, atol=1e-2), "rows not normalized"

    print("KERNEL_OK")
</pallas_src>

<mosaic_0001>
module attributes {stable_mosaic.version = 11 : i64} {
  func.func @ffnn_kernel(%arg0: i32, %arg1: memref<16x32xbf16, #tpu.memory_space<vmem>>, %arg2: memref<32x128xbf16, #tpu.memory_space<vmem>>, %arg3: memref<1x128xf32, #tpu.memory_space<vmem>>, %arg4: memref<128x128xbf16, #tpu.memory_space<vmem>>, %arg5: memref<1x128xf32, #tpu.memory_space<vmem>>, %arg6: memref<16x128xbf16, #tpu.memory_space<vmem>>) attributes {dimension_semantics = [#tpu.dimension_semantics<parallel>], iteration_bounds = array<i64: 1>, scalar_prefetch = 0 : i64, scratch_operands = 0 : i64, tpu.core_type = #tpu.core_type<tc>, window_params = [{transform_indices = @transform_0, window_bounds = array<i64: 16, 32>}, {pipeline_mode = #tpu.pipeline_mode<synchronous>, transform_indices = @transform_1, window_bounds = array<i64: 32, 128>}, {pipeline_mode = #tpu.pipeline_mode<synchronous>, transform_indices = @transform_2, window_bounds = array<i64: 1, 128>}, {pipeline_mode = #tpu.pipeline_mode<synchronous>, transform_indices = @transform_3, window_bounds = array<i64: 128, 128>}, {pipeline_mode = #tpu.pipeline_mode<synchronous>, transform_indices = @transform_4, window_bounds = array<i64: 1, 128>}, {transform_indices = @transform_5, window_bounds = array<i64: 16, 128>}]} {
    %c0 = arith.constant 0 : index
    %c0_0 = arith.constant 0 : index
    %0 = vector.load %arg1[%c0, %c0_0] : memref<16x32xbf16, #tpu.memory_space<vmem>>, vector<16x32xbf16>
    %c0_1 = arith.constant 0 : index
    %c0_2 = arith.constant 0 : index
    %1 = vector.load %arg2[%c0_1, %c0_2] : memref<32x128xbf16, #tpu.memory_space<vmem>>, vector<32x128xbf16>
    %cst = arith.constant dense<0.000000e+00> : vector<16x128xf32>
    %2 = tpu.matmul %0, %1, %cst {dimension_numbers = #tpu.dot_dimension_numbers<[1], [0], [0], [1], [0, 0, 1, 1], [], []>} : vector<16x32xbf16>, vector<32x128xbf16>, vector<16x128xf32> -> vector<16x128xf32>
    %c0_3 = arith.constant 0 : index
    %c0_4 = arith.constant 0 : index
    %3 = vector.load %arg3[%c0_3, %c0_4] : memref<1x128xf32, #tpu.memory_space<vmem>>, vector<1x128xf32>
    %4 = vector.broadcast %3 : vector<1x128xf32> to vector<16x128xf32>
    %5 = arith.addf %2, %4 : vector<16x128xf32>
    %cst_5 = arith.constant 0.000000e+00 : f32
    %6 = vector.broadcast %cst_5 : f32 to vector<16x128xf32>
    %7 = arith.maximumf %5, %6 : vector<16x128xf32>
    %8 = arith.truncf %7 : vector<16x128xf32> to vector<16x128xbf16>
    %c0_6 = arith.constant 0 : index
    %c0_7 = arith.constant 0 : index
    %9 = vector.load %arg4[%c0_6, %c0_7] : memref<128x128xbf16, #tpu.memory_space<vmem>>, vector<128x128xbf16>
    %cst_8 = arith.constant dense<0.000000e+00> : vector<16x128xf32>
    %10 = tpu.matmul %8, %9, %cst_8 {dimension_numbers = #tpu.dot_dimension_numbers<[1], [0], [0], [1], [0, 0, 1, 1], [], []>} : vector<16x128xbf16>, vector<128x128xbf16>, vector<16x128xf32> -> vector<16x128xf32>
    %c0_9 = arith.constant 0 : index
    %c0_10 = arith.constant 0 : index
    %11 = vector.load %arg5[%c0_9, %c0_10] : memref<1x128xf32, #tpu.memory_space<vmem>>, vector<1x128xf32>
    %12 = vector.broadcast %11 : vector<1x128xf32> to vector<16x128xf32>
    %13 = arith.addf %10, %12 : vector<16x128xf32>
    %cst_11 = arith.constant dense<0xFF800000> : vector<16xf32>
    %14 = vector.multi_reduction <maximumf>, %13, %cst_11 [1] : vector<16x128xf32> to vector<16xf32>
    %15 = vector.shape_cast %14 : vector<16xf32> to vector<16x1xf32>
    %16 = vector.broadcast %15 : vector<16x1xf32> to vector<16x128xf32>
    %17 = arith.subf %13, %16 : vector<16x128xf32>
    %18 = math.exp %17 : vector<16x128xf32>
    %cst_12 = arith.constant dense<0.000000e+00> : vector<16xf32>
    %19 = vector.multi_reduction <add>, %18, %cst_12 [1] : vector<16x128xf32> to vector<16xf32>
    %20 = vector.shape_cast %19 : vector<16xf32> to vector<16x1xf32>
    %21 = math.log %20 : vector<16x1xf32>
    %22 = vector.broadcast %21 : vector<16x1xf32> to vector<16x128xf32>
    %23 = arith.subf %17, %22 : vector<16x128xf32>
    %24 = arith.truncf %23 : vector<16x128xf32> to vector<16x128xbf16>
    %c0_13 = arith.constant 0 : index
    %c0_14 = arith.constant 0 : index
    %25 = vector.load %arg6[%c0_13, %c0_14] : memref<16x128xbf16, #tpu.memory_space<vmem>>, vector<16x128xbf16>
    tpu.vector_store %arg6[%c0_13, %c0_14], %24 {strides = array<i32>} : memref<16x128xbf16, #tpu.memory_space<vmem>>, vector<16x128xbf16>,
    return
  }
  func.func @transform_0(%arg0: i32) -> (i32, i32) {
    %c0_i32 = arith.constant 0 : i32
    %c0_i32_0 = arith.constant 0 : i32
    return %arg0, %c0_i32 : i32, i32
  }
  func.func @transform_1(%arg0: i32) -> (i32, i32) {
    %c0_i32 = arith.constant 0 : i32
    %c0_i32_0 = arith.constant 0 : i32
    %c0_i32_1 = arith.constant 0 : i32
    return %c0_i32, %c0_i32_0 : i32, i32
  }
  func.func @transform_2(%arg0: i32) -> (i32, i32) {
    %c0_i32 = arith.constant 0 : i32
    %c0_i32_0 = arith.constant 0 : i32
    %c0_i32_1 = arith.constant 0 : i32
    return %c0_i32, %c0_i32_0 : i32, i32
  }
  func.func @transform_3(%arg0: i32) -> (i32, i32) {
    %c0_i32 = arith.constant 0 : i32
    %c0_i32_0 = arith.constant 0 : i32
    %c0_i32_1 = arith.constant 0 : i32
    return %c0_i32, %c0_i32_0 : i32, i32
  }
  func.func @transform_4(%arg0: i32) -> (i32, i32) {
    %c0_i32 = arith.constant 0 : i32
    %c0_i32_0 = arith.constant 0 : i32
    %c0_i32_1 = arith.constant 0 : i32
    return %c0_i32, %c0_i32_0 : i32, i32
  }
  func.func @transform_5(%arg0: i32) -> (i32, i32) {
    %c0_i32 = arith.constant 0 : i32
    %c0_i32_0 = arith.constant 0 : i32
    return %arg0, %c0_i32 : i32, i32
  }
}

</mosaic_0001>

<llo_original>
// kernel: ffnn_forward.1
$region0: #{ffnn_forward.1}
  #allocation0 [shape = 'u32[]', space=smem, size = 0x4, offset = 0x4, fixed_abs, tag = 'smem constant byte address 0x4 - core index']
  #allocation1 [shape = 'u32[144,128]{1,0:T(1,128)}', space=vmem, size = 0x12000, scoped, tag = 'internal scratch']
  %s0 = inlined_call_operand.vmem [shape: bf16[16,32], index: 0, kind: input, shape index: {}]
  %s1 = inlined_call_operand.vmem [shape: bf16[32,128], index: 1, kind: input, shape index: {}]
  %s2 = inlined_call_operand.vmem [shape: f32[1,128], index: 2, kind: input, shape index: {}]
  %s3 = inlined_call_operand.hbm [shape: bf16[128,128], index: 3, kind: input, shape index: {}]
  %s4 = inlined_call_operand.vmem [shape: f32[1,128], index: 4, kind: input, shape index: {}]
  %s5 = inlined_call_operand.vmem [shape: bf16[16,128], index: 5, kind: output, shape index: {}]
  %s6 = sld [smem:[#allocation0]]
  $region34: #{ffnn_forward.1} parent=0
    _
  %s8 = ssub.s32 1, %s6
  %s9 = scalar_select 0, %s8, %s6
  $region1: #{ffnn_forward.1} parent=0
    #allocation2 [shape = 'u8[32768]{0}', space=vmem, size = 0x8000, scoped, tag = 'input window, operand 3, single buffered']
    #allocation3 [shape = 's32[1]{0}', space=sflag, size = 0x4, scoped, tag = 'scoped memory for ffnn_forward.1']
    %10 = vsyncpa [#allocation3], 0
    // Predicated region
    $region2: #{ffnn_forward.1} parent=1 // pred_check
      _
    $region3: #{ffnn_forward.1} parent=1 // pred_check_branch
      %12 = sbr.rel (0) target = $region5
    $region4: #{ffnn_forward.1} parent=1 // pred_region
      _
    $region5: #{ffnn_forward.1} parent=1 // pred_fallthru
      _
    // Predicated region
    $region6: #{ffnn_forward.1} parent=1 // pred_check
      _
    $region7: #{ffnn_forward.1} parent=1 // pred_check_branch
      %14 = sbr.rel (0) target = $region9
    $region8: #{ffnn_forward.1} parent=1 // pred_region
      _
    $region9: #{ffnn_forward.1} parent=1 // pred_fallthru
      _
    // Predicated region
    $region10: #{ffnn_forward.1} parent=1 // pred_check
      _
    $region11: #{ffnn_forward.1} parent=1 // pred_check_branch
      %16 = sbr.rel (0) target = $region13
    $region12: #{ffnn_forward.1} parent=1 // pred_region
      _
    $region13: #{ffnn_forward.1} parent=1 // pred_fallthru
      _
    // Predicated region
    $region14: #{ffnn_forward.1} parent=1 // pred_check
      _
    $region15: #{ffnn_forward.1} parent=1 // pred_check_branch
      %18 = sbr.rel (0) target = $region17
    $region16: #{ffnn_forward.1} parent=1 // pred_region
      %s20 = ssub.s32 1024, 1024
      %21 = vsyncadd [#allocation3], %s20
      %s22 = sshll.u32 [#allocation2], 4
      %s23 = int_to_ptr.vmem [resolvable:$true] %s22
      %28 = dma.hbm_to_vmem [thread:$0]  %s3, 1024, %s23, [#allocation3], 64, 64, 4
    $region17: #{ffnn_forward.1} parent=1 // pred_fallthru
      _
    // Predicated region
    $region18: #{ffnn_forward.1} parent=1 // pred_check
      _
    $region19: #{ffnn_forward.1} parent=1 // pred_check_branch
      %30 = sbr.rel (0) target = $region21
    $region20: #{ffnn_forward.1} parent=1 // pred_region
      _
    $region21: #{ffnn_forward.1} parent=1 // pred_fallthru
      _
    // Predicated region
    $region22: #{ffnn_forward.1} parent=1 // pred_check
      _
    $region23: #{ffnn_forward.1} parent=1 // pred_check_branch
      %32 = sbr.rel (0) target = $region25
    $region24: #{ffnn_forward.1} parent=1 // pred_region
      %33 = dma.done [#allocation3], 1024
    $region25: #{ffnn_forward.1} parent=1 // pred_fallthru
      _
    %v35 = vld [vmem:[%s0] sm:$0xf]
    %v36 = vld [vmem:[%s0 + $0x4] sm:$0xf]
    %v37 = vld [vmem:[%s1] sm:$0xf]
    %v38 = vld [vmem:[%s1 + $0x4] sm:$0xf]
    %v39 = vld [vmem:[%s1 + $0x8] sm:$0xf]
    %v40 = vld [vmem:[%s1 + $0xc] sm:$0xf]
    %v41 = vld [vmem:[%s2] sm:$0x1]
    %v43 = vlaneseq
    %v44 = vshrl.u32 %v43, 7
    %v45 = vsub.s32 0, %v44
    %v46 = vrot.slane %v41, %v45
    %v50 = vunpack.c.l.b16 %v35
    %v51 = vunpack.c.l.b16 %v36
    %v52 = vpack.c.b16 %v51, %v50
    %v57 = vunpack.c.l.b16 %v37
    %v58 = vunpack.c.l.b16 %v38
    %v59 = vunpack.c.l.b16 %v39
    %v60 = vunpack.c.l.b16 %v40
    %v61 = vpack.c.b16 %v58, %v57
    %v62 = vpack.c.b16 %v60, %v59
    %vm65 = vcmask 261120
    %v67 = vsel %vm65, %v52, 0
    %69 = vmatprep.subr.bf16.mxu0 0
    %70 = vmatpush1.bf16.msra.mxu0 %v61
    %71 = vmatprep.subr.bf16.mxu0 0
    %72 = vmatpush1.bf16.msra.mxu0 %v62
    %73 = vmatprep.subr.bf16.mxu0 0
    %74 = vmatpush1.bf16.msra.mxu0 0
    %75 = vmatprep.subr.bf16.mxu0 0
    %76 = vmatpush1.bf16.msra.mxu0 0
    %77 = vmatprep.subr.bf16.mxu0 0
    %78 = vmatpush1.bf16.msra.mxu0 0
    %79 = vmatprep.subr.bf16.mxu0 0
    %80 = vmatpush1.bf16.msra.mxu0 0
    %81 = vmatprep.subr.bf16.mxu0 0
    %82 = vmatpush1.bf16.msra.mxu0 0
    %83 = vmatprep.subr.bf16.mxu0 0
    %84 = vmatpush1.bf16.msra.mxu0 0
    %85 = vmatprep.subr.bf16.mxu0 0
    %86 = vmatpush1.bf16.msra.mxu0 0
    %87 = vmatprep.subr.bf16.mxu0 0
    %88 = vmatpush1.bf16.msra.mxu0 0
    %89 = vmatprep.subr.bf16.mxu0 0
    %90 = vmatpush1.bf16.msra.mxu0 0
    %91 = vmatprep.subr.bf16.mxu0 0
    %92 = vmatpush1.bf16.msra.mxu0 0
    %93 = vmatprep.subr.bf16.mxu0 0
    %94 = vmatpush1.bf16.msra.mxu0 0
    %95 = vmatprep.subr.bf16.mxu0 0
    %96 = vmatpush1.bf16.msra.mxu0 0
    %97 = vmatprep.subr.bf16.mxu0 0
    %98 = vmatpush1.bf16.msra.mxu0 0
    %99 = vmatprep.subr.bf16.mxu0 0
    %100 = vmatpush1.bf16.msra.mxu0 0
    %101 = vmatprep.mubr.bf16.mxu0 0
    %102 = vmatmul.mubr.bf16.gmra.mrb[0].mxu0 %v67
    %v103 = vpop.f32.mrb[0].mxu0
    %v104 = vadd.f32 %v46, %v103
    %v105 = vpop.f32.mrb[0].mxu0
    %v106 = vpop.f32.mrb[0].mxu0
    %v107 = vadd.f32 %v46, %v106
    %v108 = vpop.f32.mrb[0].mxu0
    %109 = vdwg.mxu0
    %v110 = vmax.f32 %v104, 0.0
    %v111 = vmax.f32 %v107, 0.0
    %v112 = vpack.c.bf16 %v111, %v110
    %v113 = vld [vmem:[#allocation2] sm:$0xf]
    %v114 = vld [vmem:[#allocation2 + $0x4] sm:$0xf]
    %v115 = vld [vmem:[#allocation2 + $0x8] sm:$0xf]
    %v116 = vld [vmem:[#allocation2 + $0xc] sm:$0xf]
    %v117 = vld [vmem:[#allocation2 + $0x10] sm:$0xf]
    %v118 = vld [vmem:[#allocation2 + $0x14] sm:$0xf]
    %v119 = vld [vmem:[#allocation2 + $0x18] sm:$0xf]
    %v120 = vld [vmem:[#allocation2 + $0x1c] sm:$0xf]
    %v121 = vld [vmem:[#allocation2 + $0x20] sm:$0xf]
    %v122 = vld [vmem:[#allocation2 + $0x24] sm:$0xf]
    %v123 = vld [vmem:[#allocation2 + $0x28] sm:$0xf]
    %v124 = vld [vmem:[#allocation2 + $0x2c] sm:$0xf]
    %v125 = vld [vmem:[#allocation2 + $0x30] sm:$0xf]
    %v126 = vld [vmem:[#allocation2 + $0x34] sm:$0xf]
    %v127 = vld [vmem:[#allocation2 + $0x38] sm:$0xf]
    %v128 = vld [vmem:[#allocation2 + $0x3c] sm:$0xf]
    %v129 = vld [vmem:[%s4] sm:$0x1]
    %v131 = vlaneseq
    %v132 = vshrl.u32 %v131, 7
    %v133 = vsub.s32 0, %v132
    %v134 = vrot.slane %v129, %v133
    %v152 = vunpack.c.l.b16 %v113
    %v153 = vunpack.c.l.b16 %v114
    %v154 = vunpack.c.l.b16 %v115
    %v155 = vunpack.c.l.b16 %v116
    %v156 = vunpack.c.l.b16 %v117
    %v157 = vunpack.c.l.b16 %v118
    %v158 = vunpack.c.l.b16 %v119
    %v159 = vunpack.c.l.b16 %v120
    %v160 = vunpack.c.l.b16 %v121
    %v161 = vunpack.c.l.b16 %v122
    %v162 = vunpack.c.l.b16 %v123
    %v163 = vunpack.c.l.b16 %v124
    %v164 = vunpack.c.l.b16 %v125
    %v165 = vunpack.c.l.b16 %v126
    %v166 = vunpack.c.l.b16 %v127
    %v167 = vunpack.c.l.b16 %v128
    %v168 = vpack.c.b16 %v153, %v152
    %v169 = vpack.c.b16 %v155, %v154
    %v170 = vpack.c.b16 %v157, %v156
    %v171 = vpack.c.b16 %v159, %v158
    %v172 = vpack.c.b16 %v161, %v160
    %v173 = vpack.c.b16 %v163, %v162
    %v174 = vpack.c.b16 %v165, %v164
    %v175 = vpack.c.b16 %v167, %v166
    %184 = vmatprep.subr.bf16.mxu0 0
    %185 = vmatpush1.bf16.msra.mxu0 %v168
    %186 = vmatprep.subr.bf16.mxu0 0
    %187 = vmatpush1.bf16.msra.mxu0 %v169
    %188 = vmatprep.subr.bf16.mxu0 0
    %189 = vmatpush1.bf16.msra.mxu0 %v170
    %190 = vmatprep.subr.bf16.mxu0 0
    %191 = vmatpush1.bf16.msra.mxu0 %v171
    %192 = vmatprep.subr.bf16.mxu0 0
    %193 = vmatpush1.bf16.msra.mxu0 %v172
    %194 = vmatprep.subr.bf16.mxu0 0
    %195 = vmatpush1.bf16.msra.mxu0 %v173
    %196 = vmatprep.subr.bf16.mxu0 0
    %197 = vmatpush1.bf16.msra.mxu0 %v174
    %198 = vmatprep.subr.bf16.mxu0 0
    %199 = vmatpush1.bf16.msra.mxu0 %v175
    %200 = vmatprep.subr.bf16.mxu0 0
    %201 = vmatpush1.bf16.msra.mxu0 0
    %202 = vmatprep.subr.bf16.mxu0 0
    %203 = vmatpush1.bf16.msra.mxu0 0
    %204 = vmatprep.subr.bf16.mxu0 0
    %205 = vmatpush1.bf16.msra.mxu0 0
    %206 = vmatprep.subr.bf16.mxu0 0
    %207 = vmatpush1.bf16.msra.mxu0 0
    %208 = vmatprep.subr.bf16.mxu0 0
    %209 = vmatpush1.bf16.msra.mxu0 0
    %210 = vmatprep.subr.bf16.mxu0 0
    %211 = vmatpush1.bf16.msra.mxu0 0
    %212 = vmatprep.subr.bf16.mxu0 0
    %213 = vmatpush1.bf16.msra.mxu0 0
    %214 = vmatprep.subr.bf16.mxu0 0
    %215 = vmatpush1.bf16.msra.mxu0 0
    %216 = vmatprep.mubr.bf16.mxu0 0
    %217 = vmatmul.mubr.bf16.gmra.mrb[0].mxu0 %v112
    %v218 = vpop.f32.mrb[0].mxu0
    %v219 = vadd.f32 %v134, %v218
    %v220 = vpop.f32.mrb[0].mxu0
    %v221 = vpop.f32.mrb[0].mxu0
    %v222 = vadd.f32 %v134, %v221
    %v223 = vpop.f32.mrb[0].mxu0
    %224 = vdwg.mxu0
    %225 = vmax.xlane.f32.xlu0 %v219
    %v226 = vpop.xlane.xlu0 %225
    %227 = vmax.xlane.f32.xlu0 %v222
    %v228 = vpop.xlane.xlu0 %227
    %v229 = vsub.f32 %v219, %v226
    %v230 = vsub.f32 %v222, %v228
    %v231 = vmul.f32 %v229, 1.442695
    %v232 = vpow.pop %v231
    %v233 = vmul.f32 %v230, 1.442695
    %v234 = vpow.pop %v233
    %235 = vadd.xlane.f32.xlu0 %v232
    %v236 = vpop.xlane.xlu0 %235
    %237 = vadd.xlane.f32.xlu0 %v234
    %v238 = vpop.xlane.xlu0 %237
    %v239 = vlog2.pop %v236
    %v240 = vmul.f32 %v239, 0.6931472
    %v241 = vlog2.pop %v238
    %v242 = vmul.f32 %v241, 0.6931472
    %v243 = vsub.f32 %v229, %v240
    %v244 = vsub.f32 %v230, %v242
    %v245 = vpack.c.bf16 %v244, %v243
    %v247 = vunpack.c.l.b16 %v245
    %v248 = vunpack.c.h.b16 %v245
    %v249 = vpack.c.b16 %v247, %v247
    %v250 = vpack.c.b16 %v248, %v248
    %253 = vst [vmem:[%s5] sm:$0xf] %v249
    %254 = vst [vmem:[%s5 + $0x4] sm:$0xf] %v250
    // Predicated region
    $region26: #{ffnn_forward.1} parent=1 // pred_check
      _
    $region27: #{ffnn_forward.1} parent=1 // pred_check_branch
      %256 = sbr.rel (0) target = $region29
    $region28: #{ffnn_forward.1} parent=1 // pred_region
      _
    $region29: #{ffnn_forward.1} parent=1 // pred_fallthru
      _
    // Predicated region
    $region30: #{ffnn_forward.1} parent=1 // pred_check
      _
    $region31: #{ffnn_forward.1} parent=1 // pred_check_branch
      %258 = sbr.rel (0) target = $region33
    $region32: #{ffnn_forward.1} parent=1 // pred_region
      _
    $region33: #{ffnn_forward.1} parent=1 // pred_fallthru
      _
    %259 = vsyncpa [#allocation3], 1

</llo_original>
